<compile_context>
chip_gen: v6e
topology: v6e:2x2x1
jax: 0.10.0
libtpu: 0.0.40
codegen_flags: <defaults>
</compile_context>

<pallas_src>
import math

import jax
import jax.numpy as jnp
from jax.experimental import pallas as pl
from jax.experimental.pallas import tpu as pltpu


def _round_up(x: int, m: int) -> int:
    return ((x + m - 1) // m) * m


def _node_apply_kernel(x_ref, w_ref, b_ref, o_ref):
    # x_ref: (TM, in_dim)  w_ref: (in_dim, TN)  b_ref: (1, TN)  o_ref: (TM, TN)
    acc = jnp.dot(x_ref[...], w_ref[...], preferred_element_type=jnp.float32)
    o_ref[...] = (acc + b_ref[...]).astype(o_ref.dtype)


def _vmem_limit_bytes() -> int:
    try:
        cap = int(pltpu.get_tpu_info().vmem_capacity_bytes)
    except Exception:
        cap = 64 * 1024 * 1024  # conservative: v7x per-TC physical VMEM
    return min(int(cap * 0.8), 112 * 1024 * 1024)


def prepare_linear_params(weight, bias, compute_dtype=None):
    """One-time (amortized) prep of nn.Linear params for node_apply.

    weight: [out_dim, in_dim] (PyTorch layout); bias: [out_dim].
    Returns (w_t [in_dim, out_dim_p], b2 [1, out_dim_p] f32, out_dim), where
    out_dim_p is out_dim padded to a multiple of 128 (lane-dense stores).
    """
    out_dim, in_dim = weight.shape
    out_dim_p = _round_up(out_dim, 128)
    w_t = weight.T
    if out_dim_p != out_dim:
        w_t = jnp.pad(w_t, ((0, 0), (0, out_dim_p - out_dim)))
    if compute_dtype is not None:
        w_t = w_t.astype(compute_dtype)
    b2 = bias.astype(jnp.float32)
    if out_dim_p != out_dim:
        b2 = jnp.pad(b2, (0, out_dim_p - out_dim))
    return w_t, b2.reshape(1, out_dim_p), out_dim


def node_apply(h, w_t, b2, out_dim, *, block_rows=4096):
    """h' = h @ W.T + b with params pre-prepared by prepare_linear_params.

    h: [N, in_dim]. Returns [N, out_dim] in h's original dtype. The matmul
    runs in w_t.dtype (f32 or bf16); accumulation and bias add are f32.
    """
    n, in_dim = h.shape
    out_dim_p = b2.shape[1]
    out_dtype = h.dtype

    # bf16 (or other reduced-precision) compute path: cast h to match weight.
    if h.dtype != w_t.dtype:
        h = h.astype(w_t.dtype)

    x_isz = h.dtype.itemsize
    w_isz = w_t.dtype.itemsize
    o_isz = jnp.dtype(out_dtype).itemsize

    vmem_limit = _vmem_limit_bytes()
    budget = int(vmem_limit * 0.7)  # headroom for compiler scratch / regalloc

    # --- column (out_dim) tile: keep the weight stripe comfortably resident.
    def _stripe_bytes(t):  # counted at 2 buffers: safe even without Buffered(1)
        return 2 * (in_dim * t * w_isz + t * 4)

    tn = out_dim_p
    if _stripe_bytes(tn) > budget // 2:
        tn = ((budget // 2) // (2 * (in_dim * w_isz + 4))) // 128 * 128
        tn = max(128, min(tn, out_dim_p))

    # --- row tile: fill remaining budget with double-buffered x / out blocks.
    per_row = 2 * (in_dim * x_isz + tn * o_isz)
    rem = max(budget - _stripe_bytes(tn), 8 * per_row)
    tm = min(block_rows, rem // per_row)
    tm = max(8, (tm // 8) * 8)
    tm = min(tm, _round_up(n, 8))
    if n >= 16:  # keep >= 2 row tiles so both v7x TensorCores get grid work
        tm = min(tm, _round_up(pl.cdiv(n, 2), 8))

    ni = pl.cdiv(n, tm)
    nj = pl.cdiv(out_dim_p, tn)
    weight_resident = (nj == 1)

    cost = pl.CostEstimate(
        flops=2 * n * in_dim * out_dim_p,
        transcendentals=0,
        bytes_accessed=(n * in_dim * x_isz + in_dim * out_dim_p * w_isz
                        + out_dim_p * 4 + n * out_dim_p * o_isz),
    )

    def _run(single_buffer_resident):
        res_kw = {}
        if weight_resident and single_buffer_resident:
            # Resident weight/bias (constant index_map): one VMEM buffer is enough.
            res_kw = dict(pipeline_mode=pl.Buffered(1))
        grid_spec = pltpu.PrefetchScalarGridSpec(
            num_scalar_prefetch=0,
            grid=(ni, nj),
            in_specs=[
                pl.BlockSpec((tm, in_dim), lambda i, j: (i, 0)),        # streamed rows
                pl.BlockSpec((in_dim, tn), lambda i, j: (0, j), **res_kw),
                pl.BlockSpec((1, tn), lambda i, j: (0, j), **res_kw),
            ],
            out_specs=pl.BlockSpec((tm, tn), lambda i, j: (i, j)),
        )
        return pl.pallas_call(
            _node_apply_kernel,
            out_shape=jax.ShapeDtypeStruct((n, out_dim_p), out_dtype),
            grid_spec=grid_spec,
            compiler_params=pltpu.CompilerParams(
                dimension_semantics=("parallel", "parallel"),
                vmem_limit_bytes=vmem_limit,
            ),
            cost_estimate=cost,
        )(h, w_t, b2)

    try:
        out_p = _run(True)
    except Exception:
        # Fallback if single-buffered pipeline_mode is rejected by this jax build.
        out_p = _run(False)

    if out_dim_p != out_dim:
        out_p = out_p[:, :out_dim]
    return out_p


if __name__ == "__main__":
    # Shapes consistent with the module's forward: node.data['h'] is [N, in_dim].
    num_nodes, in_dim, out_dim = 8, 32, 32

    key = jax.random.PRNGKey(0)
    k_h, k_w, k_b = jax.random.split(key, 3)

    h = jax.random.normal(k_h, (num_nodes, in_dim), dtype=jnp.float32)

    # Deterministic nn.Linear-style init: U(-1/sqrt(in_dim), 1/sqrt(in_dim))
    bound = 1.0 / math.sqrt(in_dim)
    weight = jax.random.uniform(
        k_w, (out_dim, in_dim), minval=-bound, maxval=bound, dtype=jnp.float32
    )
    bias = jax.random.uniform(
        k_b, (out_dim,), minval=-bound, maxval=bound, dtype=jnp.float32
    )

    ref = h @ weight.T + bias

    # f32 path (matches the PyTorch reference).
    w_t, b2, od = prepare_linear_params(weight, bias)
    out = jax.block_until_ready(node_apply(h, w_t, b2, od))
    assert out.shape == (num_nodes, out_dim)
    assert jnp.allclose(out, ref, atol=1e-5, rtol=1e-5), "f32 mismatch vs reference"

    # bf16 input path (halves HBM traffic; f32 accumulation inside the kernel).
    w_t16, b2_16, od16 = prepare_linear_params(weight, bias, compute_dtype=jnp.bfloat16)
    out16 = jax.block_until_ready(node_apply(h, w_t16, b2_16, od16))
    assert out16.shape == (num_nodes, out_dim)
    assert jnp.allclose(out16, ref, atol=5e-2, rtol=5e-2), "bf16 mismatch vs reference"

    print("KERNEL_OK")
</pallas_src>

<mosaic_0001>
module attributes {stable_mosaic.version = 11 : i64} {
  func.func @_node_apply_kernel(%arg0: i32, %arg1: i32, %arg2: memref<8x32xf32, #tpu.memory_space<vmem>>, %arg3: memref<32x128xf32, #tpu.memory_space<vmem>>, %arg4: memref<1x128xf32, #tpu.memory_space<vmem>>, %arg5: memref<8x128xf32, #tpu.memory_space<vmem>>) attributes {dimension_semantics = [#tpu.dimension_semantics<parallel>, #tpu.dimension_semantics<parallel>], iteration_bounds = array<i64: 1, 1>, scalar_prefetch = 0 : i64, scratch_operands = 0 : i64, tpu.core_type = #tpu.core_type<tc>, window_params = [{transform_indices = @transform_0, window_bounds = array<i64: 8, 32>}, {pipeline_mode = #tpu.pipeline_mode<synchronous>, transform_indices = @transform_1, window_bounds = array<i64: 32, 128>}, {pipeline_mode = #tpu.pipeline_mode<synchronous>, transform_indices = @transform_2, window_bounds = array<i64: 1, 128>}, {transform_indices = @transform_3, window_bounds = array<i64: 8, 128>}]} {
    %c0 = arith.constant 0 : index
    %c0_0 = arith.constant 0 : index
    %0 = vector.load %arg2[%c0, %c0_0] : memref<8x32xf32, #tpu.memory_space<vmem>>, vector<8x32xf32>
    %c0_1 = arith.constant 0 : index
    %c0_2 = arith.constant 0 : index
    %1 = vector.load %arg3[%c0_1, %c0_2] : memref<32x128xf32, #tpu.memory_space<vmem>>, vector<32x128xf32>
    %cst = arith.constant dense<0.000000e+00> : vector<8x128xf32>
    %2 = tpu.matmul %0, %1, %cst {dimension_numbers = #tpu.dot_dimension_numbers<[1], [0], [0], [1], [0, 0, 1, 1], [], []>} : vector<8x32xf32>, vector<32x128xf32>, vector<8x128xf32> -> vector<8x128xf32>
    %c0_3 = arith.constant 0 : index
    %c0_4 = arith.constant 0 : index
    %3 = vector.load %arg4[%c0_3, %c0_4] : memref<1x128xf32, #tpu.memory_space<vmem>>, vector<1x128xf32>
    %4 = vector.broadcast %3 : vector<1x128xf32> to vector<8x128xf32>
    %5 = arith.addf %2, %4 : vector<8x128xf32>
    %c0_5 = arith.constant 0 : index
    %c0_6 = arith.constant 0 : index
    %6 = vector.load %arg5[%c0_5, %c0_6] : memref<8x128xf32, #tpu.memory_space<vmem>>, vector<8x128xf32>
    tpu.vector_store %arg5[%c0_5, %c0_6], %5 {strides = array<i32>} : memref<8x128xf32, #tpu.memory_space<vmem>>, vector<8x128xf32>,
    return
  }
  func.func @transform_0(%arg0: i32, %arg1: i32) -> (i32, i32) {
    %c0_i32 = arith.constant 0 : i32
    %c0_i32_0 = arith.constant 0 : i32
    return %arg0, %c0_i32 : i32, i32
  }
  func.func @transform_1(%arg0: i32, %arg1: i32) -> (i32, i32) {
    %c0_i32 = arith.constant 0 : i32
    %c0_i32_0 = arith.constant 0 : i32
    return %c0_i32, %arg1 : i32, i32
  }
  func.func @transform_2(%arg0: i32, %arg1: i32) -> (i32, i32) {
    %c0_i32 = arith.constant 0 : i32
    %c0_i32_0 = arith.constant 0 : i32
    return %c0_i32, %arg1 : i32, i32
  }
  func.func @transform_3(%arg0: i32, %arg1: i32) -> (i32, i32) {
    %c0_i32 = arith.constant 0 : i32
    return %arg0, %arg1 : i32, i32
  }
}

module attributes {stable_mosaic.version = 11 : i64} {
  func.func @_node_apply_kernel(%arg0: i32, %arg1: i32, %arg2: memref<8x32xf32, #tpu.memory_space<vmem>>, %arg3: memref<32x128xf32, #tpu.memory_space<vmem>>, %arg4: memref<1x128xf32, #tpu.memory_space<vmem>>, %arg5: memref<8x128xf32, #tpu.memory_space<vmem>>) attributes {dimension_semantics = [#tpu.dimension_semantics<parallel>, #tpu.dimension_semantics<parallel>], iteration_bounds = array<i64: 1, 1>, scalar_prefetch = 0 : i64, scratch_operands = 0 : i64, tpu.core_type = #tpu.core_type<tc>, window_params = [{transform_indices = @transform_0, window_bounds = array<i64: 8, 32>}, {transform_indices = @transform_1, window_bounds = array<i64: 32, 128>}, {transform_indices = @transform_2, window_bounds = array<i64: 1, 128>}, {transform_indices = @transform_3, window_bounds = array<i64: 8, 128>}]} {
    %c0 = arith.constant 0 : index
    %c0_0 = arith.constant 0 : index
    %0 = vector.load %arg2[%c0, %c0_0] : memref<8x32xf32, #tpu.memory_space<vmem>>, vector<8x32xf32>
    %c0_1 = arith.constant 0 : index
    %c0_2 = arith.constant 0 : index
    %1 = vector.load %arg3[%c0_1, %c0_2] : memref<32x128xf32, #tpu.memory_space<vmem>>, vector<32x128xf32>
    %cst = arith.constant dense<0.000000e+00> : vector<8x128xf32>
    %2 = tpu.matmul %0, %1, %cst {dimension_numbers = #tpu.dot_dimension_numbers<[1], [0], [0], [1], [0, 0, 1, 1], [], []>} : vector<8x32xf32>, vector<32x128xf32>, vector<8x128xf32> -> vector<8x128xf32>
    %c0_3 = arith.constant 0 : index
    %c0_4 = arith.constant 0 : index
    %3 = vector.load %arg4[%c0_3, %c0_4] : memref<1x128xf32, #tpu.memory_space<vmem>>, vector<1x128xf32>
    %4 = vector.broadcast %3 : vector<1x128xf32> to vector<8x128xf32>
    %5 = arith.addf %2, %4 : vector<8x128xf32>
    %c0_5 = arith.constant 0 : index
    %c0_6 = arith.constant 0 : index
    %6 = vector.load %arg5[%c0_5, %c0_6] : memref<8x128xf32, #tpu.memory_space<vmem>>, vector<8x128xf32>
    tpu.vector_store %arg5[%c0_5, %c0_6], %5 {strides = array<i32>} : memref<8x128xf32, #tpu.memory_space<vmem>>, vector<8x128xf32>,
    return
  }
  func.func @transform_0(%arg0: i32, %arg1: i32) -> (i32, i32) {
    %c0_i32 = arith.constant 0 : i32
    %c0_i32_0 = arith.constant 0 : i32
    return %arg0, %c0_i32 : i32, i32
  }
  func.func @transform_1(%arg0: i32, %arg1: i32) -> (i32, i32) {
    %c0_i32 = arith.constant 0 : i32
    %c0_i32_0 = arith.constant 0 : i32
    return %c0_i32, %arg1 : i32, i32
  }
  func.func @transform_2(%arg0: i32, %arg1: i32) -> (i32, i32) {
    %c0_i32 = arith.constant 0 : i32
    %c0_i32_0 = arith.constant 0 : i32
    return %c0_i32, %arg1 : i32, i32
  }
  func.func @transform_3(%arg0: i32, %arg1: i32) -> (i32, i32) {
    %c0_i32 = arith.constant 0 : i32
    return %arg0, %arg1 : i32, i32
  }
}

</mosaic_0001>

<llo_original>
// kernel: tpu_custom_call.1
$region0: #{tpu_custom_call.1}
  #allocation0 [shape = 'u32[]', space=smem, size = 0x4, offset = 0x4, fixed_abs, tag = 'smem constant byte address 0x4 - core index']
  #allocation1 [shape = 'u32[144,128]{1,0:T(1,128)}', space=vmem, size = 0x12000, scoped, tag = 'internal scratch']
  %s0 = inlined_call_operand.hbm [shape: f32[8,32], index: 0, kind: input, shape index: {}]
  %s1 = inlined_call_operand.hbm [shape: f32[32,128], index: 1, kind: input, shape index: {}]
  %s2 = inlined_call_operand.vmem [shape: f32[1,128], index: 2, kind: input, shape index: {}]
  %s3 = inlined_call_operand.hbm [shape: f32[8,128], index: 3, kind: output, shape index: {}]
  %s4 = sld [smem:[#allocation0]]
  $region30: #{tpu_custom_call.1} parent=0
    _
  %s6 = ssub.s32 1, %s4
  %s7 = scalar_select 0, %s6, %s4
  $region1: #{tpu_custom_call.1} parent=0
    #allocation2 [shape = 'u8[4096]{0}', space=vmem, size = 0x1000, scoped, tag = 'input window, operand 0, single buffered']
    #allocation3 [shape = 's32[1]{0}', space=sflag, size = 0x4, scoped, tag = 'scoped memory for tpu_custom_call.1']
    #allocation4 [shape = 's32[1]{0}', space=sflag, size = 0x4, scoped, tag = 'scoped memory for tpu_custom_call.1']
    #allocation5 [shape = 'u8[16384]{0}', space=vmem, size = 0x4000, scoped, tag = 'input window, operand 1, single buffered']
    #allocation6 [shape = 's32[1]{0}', space=sflag, size = 0x4, scoped, tag = 'scoped memory for tpu_custom_call.1']
    #allocation7 [shape = 'u8[4096]{0}', space=vmem, size = 0x1000, scoped, tag = 'output window, operand 0, single buffered']
    %8 = vsyncpa [#allocation3], 0
    %9 = vsyncpa [#allocation6], 0
    %10 = vsyncpa [#allocation4], 0
    // Predicated region
    $region2: #{tpu_custom_call.1} parent=1 // pred_check
      _
    $region3: #{tpu_custom_call.1} parent=1 // pred_check_branch
      %12 = sbr.rel (0) target = $region5
    $region4: #{tpu_custom_call.1} parent=1 // pred_region
      %s14 = ssub.s32 128, 128
      %15 = vsyncadd [#allocation3], %s14
      %s17 = sshll.u32 [#allocation2], 4
      %s18 = int_to_ptr.vmem [resolvable:$true] %s17
      %20 = dma.hbm_to_vmem [thread:$0]  %s0, 128, %s18, [#allocation3]
    $region5: #{tpu_custom_call.1} parent=1 // pred_fallthru
      _
    // Predicated region
    $region6: #{tpu_custom_call.1} parent=1 // pred_check
      _
    $region7: #{tpu_custom_call.1} parent=1 // pred_check_branch
      %22 = sbr.rel (0) target = $region9
    $region8: #{tpu_custom_call.1} parent=1 // pred_region
      %s24 = ssub.s32 512, 512
      %25 = vsyncadd [#allocation6], %s24
      %s26 = sshll.u32 [#allocation5], 4
      %s27 = int_to_ptr.vmem [resolvable:$true] %s26
      %32 = dma.hbm_to_vmem [thread:$0]  %s1, 512, %s27, [#allocation6], 128, 128, 8
    $region9: #{tpu_custom_call.1} parent=1 // pred_fallthru
      _
    // Predicated region
    $region10: #{tpu_custom_call.1} parent=1 // pred_check
      _
    $region11: #{tpu_custom_call.1} parent=1 // pred_check_branch
      %34 = sbr.rel (0) target = $region13
    $region12: #{tpu_custom_call.1} parent=1 // pred_region
      _
    $region13: #{tpu_custom_call.1} parent=1 // pred_fallthru
      _
    // Predicated region
    $region14: #{tpu_custom_call.1} parent=1 // pred_check
      _
    $region15: #{tpu_custom_call.1} parent=1 // pred_check_branch
      %36 = sbr.rel (0) target = $region17
    $region16: #{tpu_custom_call.1} parent=1 // pred_region
      %37 = dma.done [#allocation3], 128
    $region17: #{tpu_custom_call.1} parent=1 // pred_fallthru
      _
    // Predicated region
    $region18: #{tpu_custom_call.1} parent=1 // pred_check
      _
    $region19: #{tpu_custom_call.1} parent=1 // pred_check_branch
      %39 = sbr.rel (0) target = $region21
    $region20: #{tpu_custom_call.1} parent=1 // pred_region
      %40 = dma.done [#allocation6], 512
    $region21: #{tpu_custom_call.1} parent=1 // pred_fallthru
      _
    %v41 = vld [vmem:[#allocation2] sm:$0xff]
    %v42 = vld [vmem:[#allocation5] sm:$0xff]
    %v43 = vld [vmem:[#allocation5 + $0x8] sm:$0xff]
    %v44 = vld [vmem:[#allocation5 + $0x10] sm:$0xff]
    %v45 = vld [vmem:[#allocation5 + $0x18] sm:$0xff]
    %v46 = vld [vmem:[%s2] sm:$0x1]
    %v48 = vlaneseq
    %v49 = vshrl.u32 %v48, 7
    %v50 = vsub.s32 0, %v49
    %v51 = vrot.slane %v46, %v50
    %vm53 = vcmask 261120
    %v55 = vsel %vm53, %v41, 0
    %57 = vmatprep.subr.mxu0 0.0
    %58 = vmatpush1.msra.mxu0 0.0
    %59 = vmatprep.subr.mxu0 0.0
    %60 = vmatpush1.msra.mxu0 0.0
    %61 = vmatprep.subr.mxu0 0.0
    %62 = vmatpush1.msra.mxu0 0.0
    %63 = vmatprep.subr.mxu0 0.0
    %64 = vmatpush1.msra.mxu0 0.0
    %65 = vmatprep.subr.mxu0 0.0
    %66 = vmatpush1.msra.mxu0 0.0
    %67 = vmatprep.subr.mxu0 0.0
    %68 = vmatpush1.msra.mxu0 0.0
    %69 = vmatprep.subr.mxu0 0.0
    %70 = vmatpush1.msra.mxu0 0.0
    %71 = vmatprep.subr.mxu0 0.0
    %72 = vmatpush1.msra.mxu0 0.0
    %73 = vmatprep.subr.mxu0 0.0
    %74 = vmatpush1.msra.mxu0 0.0
    %75 = vmatprep.subr.mxu0 0.0
    %76 = vmatpush1.msra.mxu0 0.0
    %77 = vmatprep.subr.mxu0 0.0
    %78 = vmatpush1.msra.mxu0 0.0
    %79 = vmatprep.subr.mxu0 0.0
    %80 = vmatpush1.msra.mxu0 0.0
    %81 = vmatprep.subr.mxu0 0.0
    %82 = vmatpush1.msra.mxu0 %v45
    %83 = vmatprep.subr.mxu0 0.0
    %84 = vmatpush1.msra.mxu0 %v44
    %85 = vmatprep.subr.mxu0 0.0
    %86 = vmatpush1.msra.mxu0 %v43
    %87 = vmatprep.subr.mxu0 0.0
    %88 = vmatpush1.msra.mxu0 %v42
    %89 = vmatprep.subr.mxu0 0.0
    %90 = vmatpush2.msra.mxu0 0.0
    %91 = vmatprep.subr.mxu0 0.0
    %92 = vmatpush2.msra.mxu0 0.0
    %93 = vmatprep.subr.mxu0 0.0
    %94 = vmatpush2.msra.mxu0 0.0
    %95 = vmatprep.subr.mxu0 0.0
    %96 = vmatpush2.msra.mxu0 0.0
    %97 = vmatprep.subr.mxu0 0.0
    %98 = vmatpush2.msra.mxu0 0.0
    %99 = vmatprep.subr.mxu0 0.0
    %100 = vmatpush2.msra.mxu0 0.0
    %101 = vmatprep.subr.mxu0 0.0
    %102 = vmatpush2.msra.mxu0 0.0
    %103 = vmatprep.subr.mxu0 0.0
    %104 = vmatpush2.msra.mxu0 0.0
    %105 = vmatprep.subr.mxu0 0.0
    %106 = vmatpush2.msra.mxu0 0.0
    %107 = vmatprep.subr.mxu0 0.0
    %108 = vmatpush2.msra.mxu0 0.0
    %109 = vmatprep.subr.mxu0 0.0
    %110 = vmatpush2.msra.mxu0 0.0
    %111 = vmatprep.subr.mxu0 0.0
    %112 = vmatpush2.msra.mxu0 0.0
    %113 = vmatprep.subr.mxu0 0.0
    %114 = vmatpush2.msra.mxu0 0.0
    %115 = vmatprep.subr.mxu0 0.0
    %116 = vmatpush2.msra.mxu0 0.0
    %117 = vmatprep.subr.mxu0 0.0
    %118 = vmatpush2.msra.mxu0 0.0
    %119 = vmatprep.subr.mxu0 0.0
    %120 = vmatpush2.msra.mxu0 0.0
    %121 = vmatprep.mubr.f32.mxu0 0.0
    %122 = vmatmul.mubr.f32.gmra.mxu0 %v55
    %v123 = vpop.f32.mrf.mxu0
    %v124 = vadd.f32 %v51, %v123
    %v125 = vpop.f32.mrf.mxu0
    %126 = vdwg.mxu0
    %127 = vst [vmem:[#allocation7] sm:$0xff] %v124
    // Predicated region
    $region22: #{tpu_custom_call.1} parent=1 // pred_check
      _
    $region23: #{tpu_custom_call.1} parent=1 // pred_check_branch
      %129 = sbr.rel (0) target = $region25
    $region24: #{tpu_custom_call.1} parent=1 // pred_region
      %s131 = ssub.s32 128, 128
      %132 = vsyncadd [#allocation4], %s131
      %s134 = sshll.u32 [#allocation7], 4
      %s135 = int_to_ptr.vmem [resolvable:$true] %s134
      %137 = dma.vmem_to_hbm [thread:$0]  %s135, 128, %s3, [#allocation4]
    $region25: #{tpu_custom_call.1} parent=1 // pred_fallthru
      _
    // Predicated region
    $region26: #{tpu_custom_call.1} parent=1 // pred_check
      _
    $region27: #{tpu_custom_call.1} parent=1 // pred_check_branch
      %139 = sbr.rel (0) target = $region29
    $region28: #{tpu_custom_call.1} parent=1 // pred_region
      %140 = dma.done [#allocation4], 128
    $region29: #{tpu_custom_call.1} parent=1 // pred_fallthru
      _
    %141 = vsyncpa [#allocation3], 1
    %142 = vsyncpa [#allocation6], 1
    %143 = vsyncpa [#allocation4], 1

// kernel: tpu_custom_call.1
$region0: #{tpu_custom_call.1}
  #allocation0 [shape = 'u32[]', space=smem, size = 0x4, offset = 0x4, fixed_abs, tag = 'smem constant byte address 0x4 - core index']
  #allocation1 [shape = 'u32[144,128]{1,0:T(1,128)}', space=vmem, size = 0x12000, scoped, tag = 'internal scratch']
  %s0 = inlined_call_operand.hbm [shape: f32[8,32], index: 0, kind: input, shape index: {}]
  %s1 = inlined_call_operand.hbm [shape: f32[32,128], index: 1, kind: input, shape index: {}]
  %s2 = inlined_call_operand.vmem [shape: f32[1,128], index: 2, kind: input, shape index: {}]
  %s3 = inlined_call_operand.hbm [shape: f32[8,128], index: 3, kind: output, shape index: {}]
  %s4 = sld [smem:[#allocation0]]
  $region30: #{tpu_custom_call.1} parent=0
    _
  %s6 = ssub.s32 1, %s4
  %s7 = scalar_select 0, %s6, %s4
  $region1: #{tpu_custom_call.1} parent=0
    #allocation2 [shape = 'u8[4096]{0}', space=vmem, size = 0x1000, scoped, tag = 'input window, operand 0, single buffered']
    #allocation3 [shape = 's32[1]{0}', space=sflag, size = 0x4, scoped, tag = 'scoped memory for tpu_custom_call.1']
    #allocation4 [shape = 's32[1]{0}', space=sflag, size = 0x4, scoped, tag = 'scoped memory for tpu_custom_call.1']
    #allocation5 [shape = 'u8[16384]{0}', space=vmem, size = 0x4000, scoped, tag = 'input window, operand 1, single buffered']
    #allocation6 [shape = 's32[1]{0}', space=sflag, size = 0x4, scoped, tag = 'scoped memory for tpu_custom_call.1']
    #allocation7 [shape = 'u8[4096]{0}', space=vmem, size = 0x1000, scoped, tag = 'output window, operand 0, single buffered']
    %8 = vsyncpa [#allocation3], 0
    %9 = vsyncpa [#allocation6], 0
    %10 = vsyncpa [#allocation4], 0
    // Predicated region
    $region2: #{tpu_custom_call.1} parent=1 // pred_check
      _
    $region3: #{tpu_custom_call.1} parent=1 // pred_check_branch
      %12 = sbr.rel (0) target = $region5
    $region4: #{tpu_custom_call.1} parent=1 // pred_region
      %s14 = ssub.s32 128, 128
      %15 = vsyncadd [#allocation3], %s14
      %s17 = sshll.u32 [#allocation2], 4
      %s18 = int_to_ptr.vmem [resolvable:$true] %s17
      %20 = dma.hbm_to_vmem [thread:$0]  %s0, 128, %s18, [#allocation3]
    $region5: #{tpu_custom_call.1} parent=1 // pred_fallthru
      _
    // Predicated region
    $region6: #{tpu_custom_call.1} parent=1 // pred_check
      _
    $region7: #{tpu_custom_call.1} parent=1 // pred_check_branch
      %22 = sbr.rel (0) target = $region9
    $region8: #{tpu_custom_call.1} parent=1 // pred_region
      %s24 = ssub.s32 512, 512
      %25 = vsyncadd [#allocation6], %s24
      %s26 = sshll.u32 [#allocation5], 4
      %s27 = int_to_ptr.vmem [resolvable:$true] %s26
      %32 = dma.hbm_to_vmem [thread:$0]  %s1, 512, %s27, [#allocation6], 128, 128, 8
    $region9: #{tpu_custom_call.1} parent=1 // pred_fallthru
      _
    // Predicated region
    $region10: #{tpu_custom_call.1} parent=1 // pred_check
      _
    $region11: #{tpu_custom_call.1} parent=1 // pred_check_branch
      %34 = sbr.rel (0) target = $region13
    $region12: #{tpu_custom_call.1} parent=1 // pred_region
      _
    $region13: #{tpu_custom_call.1} parent=1 // pred_fallthru
      _
    // Predicated region
    $region14: #{tpu_custom_call.1} parent=1 // pred_check
      _
    $region15: #{tpu_custom_call.1} parent=1 // pred_check_branch
      %36 = sbr.rel (0) target = $region17
    $region16: #{tpu_custom_call.1} parent=1 // pred_region
      %37 = dma.done [#allocation3], 128
    $region17: #{tpu_custom_call.1} parent=1 // pred_fallthru
      _
    // Predicated region
    $region18: #{tpu_custom_call.1} parent=1 // pred_check
      _
    $region19: #{tpu_custom_call.1} parent=1 // pred_check_branch
      %39 = sbr.rel (0) target = $region21
    $region20: #{tpu_custom_call.1} parent=1 // pred_region
      %40 = dma.done [#allocation6], 512
    $region21: #{tpu_custom_call.1} parent=1 // pred_fallthru
      _
    %v41 = vld [vmem:[#allocation2] sm:$0xff]
    %v42 = vld [vmem:[#allocation5] sm:$0xff]
    %v43 = vld [vmem:[#allocation5 + $0x8] sm:$0xff]
    %v44 = vld [vmem:[#allocation5 + $0x10] sm:$0xff]
    %v45 = vld [vmem:[#allocation5 + $0x18] sm:$0xff]
    %v46 = vld [vmem:[%s2] sm:$0x1]
    %v48 = vlaneseq
    %v49 = vshrl.u32 %v48, 7
    %v50 = vsub.s32 0, %v49
    %v51 = vrot.slane %v46, %v50
    %vm53 = vcmask 261120
    %v55 = vsel %vm53, %v41, 0
    %57 = vmatprep.subr.mxu0 0.0
    %58 = vmatpush1.msra.mxu0 0.0
    %59 = vmatprep.subr.mxu0 0.0
    %60 = vmatpush1.msra.mxu0 0.0
    %61 = vmatprep.subr.mxu0 0.0
    %62 = vmatpush1.msra.mxu0 0.0
    %63 = vmatprep.subr.mxu0 0.0
    %64 = vmatpush1.msra.mxu0 0.0
    %65 = vmatprep.subr.mxu0 0.0
    %66 = vmatpush1.msra.mxu0 0.0
    %67 = vmatprep.subr.mxu0 0.0
    %68 = vmatpush1.msra.mxu0 0.0
    %69 = vmatprep.subr.mxu0 0.0
    %70 = vmatpush1.msra.mxu0 0.0
    %71 = vmatprep.subr.mxu0 0.0
    %72 = vmatpush1.msra.mxu0 0.0
    %73 = vmatprep.subr.mxu0 0.0
    %74 = vmatpush1.msra.mxu0 0.0
    %75 = vmatprep.subr.mxu0 0.0
    %76 = vmatpush1.msra.mxu0 0.0
    %77 = vmatprep.subr.mxu0 0.0
    %78 = vmatpush1.msra.mxu0 0.0
    %79 = vmatprep.subr.mxu0 0.0
    %80 = vmatpush1.msra.mxu0 0.0
    %81 = vmatprep.subr.mxu0 0.0
    %82 = vmatpush1.msra.mxu0 %v45
    %83 = vmatprep.subr.mxu0 0.0
    %84 = vmatpush1.msra.mxu0 %v44
    %85 = vmatprep.subr.mxu0 0.0
    %86 = vmatpush1.msra.mxu0 %v43
    %87 = vmatprep.subr.mxu0 0.0
    %88 = vmatpush1.msra.mxu0 %v42
    %89 = vmatprep.subr.mxu0 0.0
    %90 = vmatpush2.msra.mxu0 0.0
    %91 = vmatprep.subr.mxu0 0.0
    %92 = vmatpush2.msra.mxu0 0.0
    %93 = vmatprep.subr.mxu0 0.0
    %94 = vmatpush2.msra.mxu0 0.0
    %95 = vmatprep.subr.mxu0 0.0
    %96 = vmatpush2.msra.mxu0 0.0
    %97 = vmatprep.subr.mxu0 0.0
    %98 = vmatpush2.msra.mxu0 0.0
    %99 = vmatprep.subr.mxu0 0.0
    %100 = vmatpush2.msra.mxu0 0.0
    %101 = vmatprep.subr.mxu0 0.0
    %102 = vmatpush2.msra.mxu0 0.0
    %103 = vmatprep.subr.mxu0 0.0
    %104 = vmatpush2.msra.mxu0 0.0
    %105 = vmatprep.subr.mxu0 0.0
    %106 = vmatpush2.msra.mxu0 0.0
    %107 = vmatprep.subr.mxu0 0.0
    %108 = vmatpush2.msra.mxu0 0.0
    %109 = vmatprep.subr.mxu0 0.0
    %110 = vmatpush2.msra.mxu0 0.0
    %111 = vmatprep.subr.mxu0 0.0
    %112 = vmatpush2.msra.mxu0 0.0
    %113 = vmatprep.subr.mxu0 0.0
    %114 = vmatpush2.msra.mxu0 0.0
    %115 = vmatprep.subr.mxu0 0.0
    %116 = vmatpush2.msra.mxu0 0.0
    %117 = vmatprep.subr.mxu0 0.0
    %118 = vmatpush2.msra.mxu0 0.0
    %119 = vmatprep.subr.mxu0 0.0
    %120 = vmatpush2.msra.mxu0 0.0
    %121 = vmatprep.mubr.f32.mxu0 0.0
    %122 = vmatmul.mubr.f32.gmra.mxu0 %v55
    %v123 = vpop.f32.mrf.mxu0
    %v124 = vadd.f32 %v51, %v123
    %v125 = vpop.f32.mrf.mxu0
    %126 = vdwg.mxu0
    %127 = vst [vmem:[#allocation7] sm:$0xff] %v124
    // Predicated region
    $region22: #{tpu_custom_call.1} parent=1 // pred_check
      _
    $region23: #{tpu_custom_call.1} parent=1 // pred_check_branch
      %129 = sbr.rel (0) target = $region25
    $region24: #{tpu_custom_call.1} parent=1 // pred_region
      %s131 = ssub.s32 128, 128
      %132 = vsyncadd [#allocation4], %s131
      %s134 = sshll.u32 [#allocation7], 4
      %s135 = int_to_ptr.vmem [resolvable:$true] %s134
      %137 = dma.vmem_to_hbm [thread:$0]  %s135, 128, %s3, [#allocation4]
    $region25: #{tpu_custom_call.1} parent=1 // pred_fallthru
      _
    // Predicated region
    $region26: #{tpu_custom_call.1} parent=1 // pred_check
      _
    $region27: #{tpu_custom_call.1} parent=1 // pred_check_branch
      %139 = sbr.rel (0) target = $region29
    $region28: #{tpu_custom_call.1} parent=1 // pred_region
      %140 = dma.done [#allocation4], 128
    $region29: #{tpu_custom_call.1} parent=1 // pred_fallthru
      _
    %141 = vsyncpa [#allocation3], 1
    %142 = vsyncpa [#allocation6], 1
    %143 = vsyncpa [#allocation4], 1

</llo_original>
